<compile_context>
chip_gen: v7x
topology: tpu7x:2x2x1
jax: 0.10.0
libtpu: 0.0.40
codegen_flags: <defaults>
</compile_context>

<pallas_src>
import jax
import jax.numpy as jnp
from jax import lax
from jax.experimental import pallas as pl
from jax.experimental.pallas import tpu as pltpu

NUM_CLASSES = 4
TOKEN_OFFSET = 4   # PreEncoder hard-codes `- 4` in forward (base_token is unused there)

# TODO(synk): torch.nn.functional.one_hot raises for ids >= 8 (out of range);
# this kernel (and any JAX port) instead emits an all-zero column for them.


# ---------------------------------------------------------------------------
# Pallas kernel
# ---------------------------------------------------------------------------
def pre_encoder_kernel(ids_ref, out_ref):
    # ids_ref: (BB, 1, BL) int32 ; out_ref: (BB, NUM_CLASSES, BL) float32
    nest = ids_ref[...] - TOKEN_OFFSET                         # small tile: (BB, 1, BL)
    cls = lax.broadcasted_iota(jnp.int32, out_ref.shape, 1)    # channel index (BB, 4, BL)
    # One-hot + padding mask fused into one broadcasted compare:
    #   ids <  4    -> nest < 0  -> no channel matches -> all-zero column
    #   ids == c+4  -> nest == c -> 1.0 at channel c
    out_ref[...] = (nest == cls).astype(out_ref.dtype)


# ---------------------------------------------------------------------------
# Wrapper
# ---------------------------------------------------------------------------
def pre_encoder(input_ids, *, block_b=128, block_l=2048,
                out_dtype=jnp.float32, vmem_limit_bytes=32 * 1024 * 1024):
    """input_ids: (B, L) int -> (B, 4, L) float (channels-first, like PyTorch)."""
    B, L = input_ids.shape
    ids = input_ids.astype(jnp.int32).reshape(B, 1, L)

    # ---- L tile: keep the lane dim a multiple of 128, or take the full L ----
    if L > block_l and L % 128 == 0:
        BL = 128
        start = max(128, (min(block_l, L) // 128) * 128)
        for cand in range(start, 127, -128):
            if L % cand == 0:
                BL = cand
                break
    else:
        BL = L

    # ---- batch tile: budget the double-buffered VMEM footprint (~24 MiB) ----
    # Worst case per (b, lane) element: ids tile (1 -> 8 sublanes padded) 32 B
    # + f32 out tile (4 -> 8 sublanes padded) 32 B, x2 pipeline buffers.
    bytes_per_b_lane = 2 * (8 * 4 + 8 * 4)          # 128 B
    vmem_budget = 24 * 1024 * 1024
    bb_cap = max(1, min(block_b, B, vmem_budget // (bytes_per_b_lane * BL)))

    BB = 1
    for d in range(bb_cap, 0, -1):                  # largest divisor of B <= cap
        if B % d == 0:
            BB = d
            break

    pad_b = 0
    if BB < max(1, bb_cap // 4) and B > bb_cap:
        # No decent divisor of B: pad the batch rather than running many tiny
        # grid steps (padded rows compare false everywhere -> zeros, sliced off).
        BB = bb_cap
        pad_b = (-B) % BB
        ids = jnp.pad(ids, ((0, pad_b), (0, 0), (0, 0)))
    Bp = B + pad_b

    # Keep >= 2 grid steps when there is enough work so v7x's two TensorCores
    # both get a share (no effect on single-core v5e/v6e).
    if (Bp // BB) * (L // BL) < 2 and BB % 2 == 0 and Bp * NUM_CLASSES * L * 4 >= (1 << 20):
        BB //= 2

    out = pl.pallas_call(
        pre_encoder_kernel,
        out_shape=jax.ShapeDtypeStruct((Bp, NUM_CLASSES, L), out_dtype),
        grid=(Bp // BB, L // BL),
        in_specs=[pl.BlockSpec((BB, 1, BL), lambda b, l: (b, 0, l))],
        out_specs=pl.BlockSpec((BB, NUM_CLASSES, BL), lambda b, l: (b, 0, l)),
        compiler_params=pltpu.CompilerParams(
            dimension_semantics=("parallel", "parallel"),
            vmem_limit_bytes=vmem_limit_bytes),
    )(ids)

    if pad_b:
        out = out[:B]        # only pays the slice-copy when padding was applied
    return out


@jax.jit
def pre_encoder_forward(input_ids):
    return pre_encoder(input_ids)


# Pure-JAX reference (mirrors the PyTorch module exactly) for verification.
def _reference(input_ids):
    nest = input_ids.astype(jnp.int32) - TOKEN_OFFSET
    mask = (nest >= 0).astype(jnp.int32)
    oh = jax.nn.one_hot(nest * mask, NUM_CLASSES, dtype=jnp.float32)
    oh = oh * mask[..., None].astype(jnp.float32)
    return jnp.transpose(oh, (0, 2, 1))              # (B, 4, L)


if __name__ == "__main__":
    key = jax.random.PRNGKey(0)

    # --- small shape matching the module's intent (tokens 0..3 = padding,
    #     4..7 = classes 0..3) -------------------------------------------------
    B, L = 2, 16
    k0, k1 = jax.random.split(key)
    input_ids = jax.random.randint(k0, (B, L), 0, TOKEN_OFFSET + NUM_CLASSES)
    out = pre_encoder_forward(input_ids)
    jax.block_until_ready(out)
    assert out.shape == (B, NUM_CLASSES, L) and out.dtype == jnp.float32
    assert jnp.array_equal(out, _reference(input_ids))

    # --- second check that exercises a multi-step (batch, L) grid ------------
    B2, L2 = 8, 256
    ids2 = jax.random.randint(k1, (B2, L2), 0, TOKEN_OFFSET + NUM_CLASSES)
    out2 = pre_encoder(ids2, block_b=4, block_l=128)   # grid = (2, 2)
    jax.block_until_ready(out2)
    assert out2.shape == (B2, NUM_CLASSES, L2)
    assert jnp.array_equal(out2, _reference(ids2))

    print("KERNEL_OK")
</pallas_src>

<mosaic_0001>
module attributes {stable_mosaic.version = 11 : i64} {
  func.func @pre_encoder_kernel(%arg0: i32, %arg1: i32, %arg2: memref<2x1x16xi32, #tpu.memory_space<vmem>>, %arg3: memref<2x4x16xf32, #tpu.memory_space<vmem>>) attributes {dimension_semantics = [#tpu.dimension_semantics<parallel>, #tpu.dimension_semantics<parallel>], iteration_bounds = array<i64: 1, 1>, scalar_prefetch = 0 : i64, scratch_operands = 0 : i64, tpu.core_type = #tpu.core_type<tc>, window_params = [{transform_indices = @transform_0, window_bounds = array<i64: 2, 1, 16>}, {transform_indices = @transform_1, window_bounds = array<i64: 2, 4, 16>}]} {
    %c0 = arith.constant 0 : index
    %c0_0 = arith.constant 0 : index
    %c0_1 = arith.constant 0 : index
    %0 = vector.load %arg2[%c0, %c0_0, %c0_1] : memref<2x1x16xi32, #tpu.memory_space<vmem>>, vector<2x1x16xi32>
    %c4_i32 = arith.constant 4 : i32
    %1 = vector.broadcast %c4_i32 : i32 to vector<2x1x16xi32>
    %2 = arith.subi %0, %1 : vector<2x1x16xi32>
    %3 = tpu.iota {dimensions = array<i32: 1>} : vector<2x4x16xi32>
    %4 = vector.broadcast %2 : vector<2x1x16xi32> to vector<2x4x16xi32>
    %5 = arith.cmpi eq, %4, %3 : vector<2x4x16xi32>
    %6 = arith.extui %5 : vector<2x4x16xi1> to vector<2x4x16xi32>
    %7 = arith.sitofp %6 : vector<2x4x16xi32> to vector<2x4x16xf32>
    %c0_2 = arith.constant 0 : index
    %c0_3 = arith.constant 0 : index
    %c0_4 = arith.constant 0 : index
    %8 = vector.load %arg3[%c0_2, %c0_3, %c0_4] : memref<2x4x16xf32, #tpu.memory_space<vmem>>, vector<2x4x16xf32>
    tpu.vector_store %arg3[%c0_2, %c0_3, %c0_4], %7 {strides = array<i32>} : memref<2x4x16xf32, #tpu.memory_space<vmem>>, vector<2x4x16xf32>,
    return
  }
  func.func @transform_0(%arg0: i32, %arg1: i32) -> (i32, i32, i32) {
    %c0_i32 = arith.constant 0 : i32
    %c0_i32_0 = arith.constant 0 : i32
    return %arg0, %c0_i32, %arg1 : i32, i32, i32
  }
  func.func @transform_1(%arg0: i32, %arg1: i32) -> (i32, i32, i32) {
    %c0_i32 = arith.constant 0 : i32
    %c0_i32_0 = arith.constant 0 : i32
    return %arg0, %c0_i32, %arg1 : i32, i32, i32
  }
}

</mosaic_0001>

<llo_original>
// kernel: pre_encoder_forward.1
$region0: #{pre_encoder_forward.1}
  #allocation0 [shape = 'u32[]', space=smem, size = 0x4, offset = 0x4, fixed_abs, tag = 'smem constant byte address 0x4 - core index']
  #allocation1 [shape = 'u32[144,128]{1,0:T(1,128)}', space=vmem, size = 0x12000, scoped, tag = 'internal scratch']
  %s0 = inlined_call_operand.vmem [shape: s32[2,1,16], index: 0, kind: input, shape index: {}]
  %s1 = inlined_call_operand.hbm [shape: f32[2,4,16], index: 1, kind: output, shape index: {}]
  %s2 = sld [smem:[#allocation0]]
  $region14: #{pre_encoder_forward.1} parent=0
    _
  %s4 = ssub.s32 1, %s2
  %s5 = scalar_select 0, %s4, %s2
  $region1: #{pre_encoder_forward.1} parent=0
    #allocation2 [shape = 'u8[4096]{0}', space=vmem, size = 0x1000, scoped, tag = 'output window, operand 0, single buffered']
    #allocation3 [shape = 's32[1]{0}', space=sflag, size = 0x4, scoped, tag = 'scoped memory for pre_encoder_forward.1']
    %6 = vsyncpa [#allocation3], 0
    // Predicated region
    $region2: #{pre_encoder_forward.1} parent=1 // pred_check
      _
    $region3: #{pre_encoder_forward.1} parent=1 // pred_check_branch
      %8 = sbr.rel (0) target = $region5
    $region4: #{pre_encoder_forward.1} parent=1 // pred_region
      _
    $region5: #{pre_encoder_forward.1} parent=1 // pred_fallthru
      _
    %v9 = vld [vmem:[%s0] sm:$0x1]
    %v10 = vld [vmem:[%s0 + $0x1] sm:$0x1]
    %v11 = vsub.s32 %v9, 4
    %v12 = vsub.s32 %v10, 4
    %v13 = vlaneseq
    %v14 = vshrl.u32 %v13, 7
    %v15 = vlaneseq
    %v16 = vshrl.u32 %v15, 7
    %v17 = vsub.s32 0, %v16
    %v18 = vrot.slane %v11, %v17
    %v19 = vlaneseq
    %v20 = vshrl.u32 %v19, 7
    %v21 = vsub.s32 0, %v20
    %v22 = vrot.slane %v12, %v21
    %vm23 = vcmp.eq.s32.totalorder %v18, %v14
    %vm24 = vcmp.eq.s32.totalorder %v22, %v14
    %v25 = vsel %vm23, 1, 0
    %v26 = vsel %vm24, 1, 0
    %v27 = vcvt.s32.f32 %v25
    %v28 = vcvt.s32.f32 %v26
    %vm29 = vcmask 125952
    %30 = vst.msk [vmem:[#allocation2] sm:$0xf] %vm29, %v27
    %31 = vst.msk [vmem:[#allocation2 + $0x4] sm:$0xf] %vm29, %v28
    // Predicated region
    $region6: #{pre_encoder_forward.1} parent=1 // pred_check
      _
    $region7: #{pre_encoder_forward.1} parent=1 // pred_check_branch
      %33 = sbr.rel (0) target = $region9
    $region8: #{pre_encoder_forward.1} parent=1 // pred_region
      %s35 = ssub.s32 128, 128
      %36 = vsyncadd [#allocation3], %s35
      %s37 = sshll.u32 [#allocation2], 4
      %s38 = int_to_ptr.vmem [resolvable:$true] %s37
      %43 = dma.vmem_to_hbm [thread:$0]  %s38, 128, %s1, [#allocation3], 64, 64, 4
    $region9: #{pre_encoder_forward.1} parent=1 // pred_fallthru
      _
    // Predicated region
    $region10: #{pre_encoder_forward.1} parent=1 // pred_check
      _
    $region11: #{pre_encoder_forward.1} parent=1 // pred_check_branch
      %45 = sbr.rel (0) target = $region13
    $region12: #{pre_encoder_forward.1} parent=1 // pred_region
      %46 = dma.done [#allocation3], 128
    $region13: #{pre_encoder_forward.1} parent=1 // pred_fallthru
      _
    %47 = vsyncpa [#allocation3], 1

</llo_original>
